<compile_context>
chip_gen: v5e
topology: v5e:2x2
jax: 0.10.0
libtpu: 0.0.40
codegen_flags: <defaults>
</compile_context>

<pallas_src>
import math
from itertools import accumulate

import jax
import jax.numpy as jnp
from jax.experimental import pallas as pl
from jax.experimental.pallas import tpu as pltpu


def _round_up(n: int, m: int) -> int:
    return ((n + m - 1) // m) * m


# ----------------------------------------------------------------------------
# FlatParameter-style metadata + flatten/unflatten glue (host-side, mirrors
# FlatParameter.__init__ / get_param_views)
# ----------------------------------------------------------------------------
class FlatParamMeta:
    def __init__(self, param_shapes):
        self.param_shapes = [tuple(s) for s in param_shapes]
        self.param_numels = [int(math.prod(s)) for s in self.param_shapes]
        self.full_numel = sum(self.param_numels)
        cum = list(accumulate(self.param_numels))
        self.param_offsets = list(zip([0] + cum[:-1], [e - 1 for e in cum]))

    def get_param_views(self, flat_param):
        assert flat_param.size == self.full_numel
        views, start = [], 0
        for numel, shape in zip(self.param_numels, self.param_shapes):
            views.append(flat_param[start:start + numel].reshape(shape))
            start += numel
        return views


def flatten_params(params):
    """FlatParameter.__new__: concat of reshape(-1) of every param."""
    return jnp.concatenate([p.reshape(-1) for p in params], axis=0)


# ----------------------------------------------------------------------------
# Pallas kernel: fused Linear -> ReLU -> Linear.
#   x_ref : [tb, D_in]   x.dtype (cast to bf16 in-kernel for the MXU)
#   w1_ref: [D_in, H]    bf16, pre-transposed (weight-stationary, resident)
#   b1_ref: [1, H]       f32
#   w2_ref: [H, D_out]   bf16, pre-transposed (resident)
#   b2_ref: [1, D_out]   f32
#   o_ref : [tb, D_out]  x.dtype (unpadded output block, no wrapper-side slice)
# ----------------------------------------------------------------------------
def _mlp_kernel(x_ref, w1_ref, b1_ref, w2_ref, b2_ref, o_ref):
    x = x_ref[...].astype(w1_ref.dtype)                       # VPU cast, free-ish
    h = jnp.dot(x, w1_ref[...], preferred_element_type=jnp.float32)
    h = jnp.maximum(h + b1_ref[...], 0.0)                     # bias + ReLU in f32
    o = jnp.dot(h.astype(w2_ref.dtype), w2_ref[...],
                preferred_element_type=jnp.float32)
    o_ref[...] = (o + b2_ref[...]).astype(o_ref.dtype)


def _choose_tb(B: int, cap: int = 1024) -> int:
    """Batch-tile: full batch for small B, otherwise >=2 tiles (v7x 2-TC work)
    capped at 1024 rows (VMEM is a non-issue on v5e/v6e/v7x at this size)."""
    if B <= 256:
        return B
    return min(cap, _round_up(pl.cdiv(B, 2), 8))


def mlp_forward_pallas(x, w1t, b1r, w2t, b2r, *, tb=None):
    B, D_in = x.shape
    H = w1t.shape[1]
    D_out = w2t.shape[1]
    if tb is None:
        tb = _choose_tb(B)

    itemsize = jnp.dtype(x.dtype).itemsize
    cost = pl.CostEstimate(
        flops=2 * B * (D_in * H + H * D_out),
        transcendentals=0,
        bytes_accessed=int(
            B * D_in * itemsize                                   # x
            + w1t.size * jnp.dtype(w1t.dtype).itemsize            # W1
            + w2t.size * jnp.dtype(w2t.dtype).itemsize            # W2
            + b1r.size * 4 + b2r.size * 4                         # biases (f32)
            + B * D_out * itemsize),                              # output
    )

    # TODO(synk): on v7x, if profiling shows only one TensorCore busy, switch
    # the batch axis to pltpu.CORE_PARALLEL (plain "parallel" is advisory).
    return pl.pallas_call(
        _mlp_kernel,
        out_shape=jax.ShapeDtypeStruct((B, D_out), x.dtype),
        grid=(pl.cdiv(B, tb),),                     # masked tail tile if B % tb != 0
        in_specs=[
            pl.BlockSpec((tb, D_in), lambda i: (i, 0)),     # last dim = full D_in
            pl.BlockSpec((D_in, H), lambda i: (0, 0)),      # resident weights
            pl.BlockSpec((1, H), lambda i: (0, 0)),
            pl.BlockSpec((H, D_out), lambda i: (0, 0)),
            pl.BlockSpec((1, D_out), lambda i: (0, 0)),
        ],
        out_specs=pl.BlockSpec((tb, D_out), lambda i: (i, 0)),
        compiler_params=pltpu.CompilerParams(
            dimension_semantics=("parallel",)),      # batch tiles across TCs
        cost_estimate=cost,
    )(x, w1t, b1r, w2t, b2r)


# ----------------------------------------------------------------------------
# FlattenParamsWrapper equivalent
# ----------------------------------------------------------------------------
class FlattenParamsWrapperJAX:
    """Holds a single flat_param; caches kernel-friendly parameter views once
    (pre-transposed, bf16 weights + f32 bias rows) and runs the wrapped MLP via
    the Pallas kernel inside one jitted forward."""

    def __init__(self, param_list, compute_dtype=jnp.bfloat16):
        self._meta = FlatParamMeta([p.shape for p in param_list])
        self._compute_dtype = compute_dtype
        self.flat_param = None
        self.load_flat_param(flatten_params(param_list))
        self._jit_forward = jax.jit(self._forward_impl)

    def load_flat_param(self, flat_param):
        """Replace flat_param and rebuild the cached kernel views (avoids the
        stale-weights hazard if the flat parameter is updated, e.g. training)."""
        self.flat_param = flat_param
        self._build_cached_views()

    def _build_cached_views(self):
        # FlatParameter.get_param_views(): done ONCE here instead of per forward.
        w1, b1, w2, b2 = self._meta.get_param_views(self.flat_param)
        H, D_in = w1.shape
        D_out = w2.shape[0]
        dt = self._compute_dtype
        self._w1t = jnp.asarray(w1.T, dt)               # [D_in, H], weight-stationary
        self._b1r = jnp.asarray(b1, jnp.float32).reshape(1, H)
        self._w2t = jnp.asarray(w2.T, dt)               # [H, D_out]
        self._b2r = jnp.asarray(b2, jnp.float32).reshape(1, D_out)
        self._dims = (D_in, H, D_out)

    def _forward_impl(self, x):
        return mlp_forward_pallas(x, self._w1t, self._b1r, self._w2t, self._b2r)

    def forward(self, x):
        return self._jit_forward(x)

    __call__ = forward

    # TODO(synk): state_dict pre/post hooks, shard_by_offsets and the
    # unflatten_params() context manager are host-side bookkeeping with no
    # kernel equivalent; omitted.


# ----------------------------------------------------------------------------
# Main
# ----------------------------------------------------------------------------
if __name__ == "__main__":
    key = jax.random.PRNGKey(0)
    k_x, k_w1, k_b1, k_w2, k_b2, k_x2 = jax.random.split(key, 6)

    B, D_in, H, D_out = 8, 32, 64, 32
    dtype = jnp.float32

    # Deterministic parameter init (nn.Linear(D_in,H), nn.Linear(H,D_out) shapes)
    w1 = jax.random.normal(k_w1, (H, D_in), dtype) * (1.0 / jnp.sqrt(D_in))
    b1 = jax.random.normal(k_b1, (H,), dtype) * 0.01
    w2 = jax.random.normal(k_w2, (D_out, H), dtype) * (1.0 / jnp.sqrt(H))
    b2 = jax.random.normal(k_b2, (D_out,), dtype) * 0.01

    wrapper = FlattenParamsWrapperJAX([w1, b1, w2, b2])

    def ref_bf16_matched(xin):
        bf = jnp.bfloat16
        h = jnp.dot(xin.astype(bf), w1.astype(bf).T,
                    preferred_element_type=jnp.float32) + b1
        h = jnp.maximum(h, 0.0)
        return jnp.dot(h.astype(bf), w2.astype(bf).T,
                       preferred_element_type=jnp.float32) + b2

    # --- primary small-shape test -------------------------------------------
    x = jax.random.normal(k_x, (B, D_in), dtype)
    out = jax.block_until_ready(wrapper(x))
    assert out.shape == (B, D_out)
    assert jnp.allclose(out, ref_bf16_matched(x), atol=2e-2, rtol=2e-2), \
        "mismatch vs bf16-matched ref"
    ref_f32 = jnp.maximum(x @ w1.T + b1, 0.0) @ w2.T + b2
    assert jnp.allclose(out, ref_f32, atol=5e-2, rtol=5e-2), "mismatch vs f32 ref"

    # --- non-divisible batch exercises the cdiv grid + masked tail tile ------
    B2 = 300
    x2 = jax.random.normal(k_x2, (B2, D_in), dtype)
    out2 = jax.block_until_ready(wrapper(x2))
    assert out2.shape == (B2, D_out)
    assert jnp.allclose(out2, ref_bf16_matched(x2), atol=2e-2, rtol=2e-2), \
        "mismatch on tail-tile batch"

    print("KERNEL_OK")
</pallas_src>

<mosaic_0001>
module attributes {stable_mosaic.version = 11 : i64} {
  func.func @_mlp_kernel(%arg0: i32, %arg1: memref<8x32xf32, #tpu.memory_space<vmem>>, %arg2: memref<32x64xbf16, #tpu.memory_space<vmem>>, %arg3: memref<1x64xf32, #tpu.memory_space<vmem>>, %arg4: memref<64x32xbf16, #tpu.memory_space<vmem>>, %arg5: memref<1x32xf32, #tpu.memory_space<vmem>>, %arg6: memref<8x32xf32, #tpu.memory_space<vmem>>) attributes {dimension_semantics = [#tpu.dimension_semantics<parallel>], iteration_bounds = array<i64: 1>, scalar_prefetch = 0 : i64, scratch_operands = 0 : i64, tpu.core_type = #tpu.core_type<tc>, window_params = [{transform_indices = @transform_0, window_bounds = array<i64: 8, 32>}, {pipeline_mode = #tpu.pipeline_mode<synchronous>, transform_indices = @transform_1, window_bounds = array<i64: 32, 64>}, {pipeline_mode = #tpu.pipeline_mode<synchronous>, transform_indices = @transform_2, window_bounds = array<i64: 1, 64>}, {pipeline_mode = #tpu.pipeline_mode<synchronous>, transform_indices = @transform_3, window_bounds = array<i64: 64, 32>}, {pipeline_mode = #tpu.pipeline_mode<synchronous>, transform_indices = @transform_4, window_bounds = array<i64: 1, 32>}, {transform_indices = @transform_5, window_bounds = array<i64: 8, 32>}]} {
    %c0 = arith.constant 0 : index
    %c0_0 = arith.constant 0 : index
    %0 = vector.load %arg1[%c0, %c0_0] : memref<8x32xf32, #tpu.memory_space<vmem>>, vector<8x32xf32>
    %1 = arith.truncf %0 : vector<8x32xf32> to vector<8x32xbf16>
    %c0_1 = arith.constant 0 : index
    %c0_2 = arith.constant 0 : index
    %2 = vector.load %arg2[%c0_1, %c0_2] : memref<32x64xbf16, #tpu.memory_space<vmem>>, vector<32x64xbf16>
    %cst = arith.constant dense<0.000000e+00> : vector<8x64xf32>
    %3 = tpu.matmul %1, %2, %cst {dimension_numbers = #tpu.dot_dimension_numbers<[1], [0], [0], [1], [0, 0, 1, 1], [], []>} : vector<8x32xbf16>, vector<32x64xbf16>, vector<8x64xf32> -> vector<8x64xf32>
    %c0_3 = arith.constant 0 : index
    %c0_4 = arith.constant 0 : index
    %4 = vector.load %arg3[%c0_3, %c0_4] : memref<1x64xf32, #tpu.memory_space<vmem>>, vector<1x64xf32>
    %5 = vector.broadcast %4 : vector<1x64xf32> to vector<8x64xf32>
    %6 = arith.addf %3, %5 : vector<8x64xf32>
    %cst_5 = arith.constant 0.000000e+00 : f32
    %7 = vector.broadcast %cst_5 : f32 to vector<8x64xf32>
    %8 = arith.maximumf %6, %7 : vector<8x64xf32>
    %9 = arith.truncf %8 : vector<8x64xf32> to vector<8x64xbf16>
    %c0_6 = arith.constant 0 : index
    %c0_7 = arith.constant 0 : index
    %10 = vector.load %arg4[%c0_6, %c0_7] : memref<64x32xbf16, #tpu.memory_space<vmem>>, vector<64x32xbf16>
    %cst_8 = arith.constant dense<0.000000e+00> : vector<8x32xf32>
    %11 = tpu.matmul %9, %10, %cst_8 {dimension_numbers = #tpu.dot_dimension_numbers<[1], [0], [0], [1], [0, 0, 1, 1], [], []>} : vector<8x64xbf16>, vector<64x32xbf16>, vector<8x32xf32> -> vector<8x32xf32>
    %c0_9 = arith.constant 0 : index
    %c0_10 = arith.constant 0 : index
    %12 = vector.load %arg5[%c0_9, %c0_10] : memref<1x32xf32, #tpu.memory_space<vmem>>, vector<1x32xf32>
    %13 = vector.broadcast %12 : vector<1x32xf32> to vector<8x32xf32>
    %14 = arith.addf %11, %13 : vector<8x32xf32>
    %c0_11 = arith.constant 0 : index
    %c0_12 = arith.constant 0 : index
    %15 = vector.load %arg6[%c0_11, %c0_12] : memref<8x32xf32, #tpu.memory_space<vmem>>, vector<8x32xf32>
    tpu.vector_store %arg6[%c0_11, %c0_12], %14 {strides = array<i32>} : memref<8x32xf32, #tpu.memory_space<vmem>>, vector<8x32xf32>,
    return
  }
  func.func @transform_0(%arg0: i32) -> (i32, i32) {
    %c0_i32 = arith.constant 0 : i32
    %c0_i32_0 = arith.constant 0 : i32
    return %arg0, %c0_i32 : i32, i32
  }
  func.func @transform_1(%arg0: i32) -> (i32, i32) {
    %c0_i32 = arith.constant 0 : i32
    %c0_i32_0 = arith.constant 0 : i32
    %c0_i32_1 = arith.constant 0 : i32
    return %c0_i32, %c0_i32_0 : i32, i32
  }
  func.func @transform_2(%arg0: i32) -> (i32, i32) {
    %c0_i32 = arith.constant 0 : i32
    %c0_i32_0 = arith.constant 0 : i32
    %c0_i32_1 = arith.constant 0 : i32
    return %c0_i32, %c0_i32_0 : i32, i32
  }
  func.func @transform_3(%arg0: i32) -> (i32, i32) {
    %c0_i32 = arith.constant 0 : i32
    %c0_i32_0 = arith.constant 0 : i32
    %c0_i32_1 = arith.constant 0 : i32
    return %c0_i32, %c0_i32_0 : i32, i32
  }
  func.func @transform_4(%arg0: i32) -> (i32, i32) {
    %c0_i32 = arith.constant 0 : i32
    %c0_i32_0 = arith.constant 0 : i32
    %c0_i32_1 = arith.constant 0 : i32
    return %c0_i32, %c0_i32_0 : i32, i32
  }
  func.func @transform_5(%arg0: i32) -> (i32, i32) {
    %c0_i32 = arith.constant 0 : i32
    %c0_i32_0 = arith.constant 0 : i32
    return %arg0, %c0_i32 : i32, i32
  }
}

</mosaic_0001>

<llo_original>
// kernel: _forward_impl.1
$region0: #{_forward_impl.1}
  #allocation0 [shape = 'u32[]', space=smem, size = 0x4, offset = 0x4, fixed_abs, tag = 'smem constant byte address 0x4 - core index']
  #allocation1 [shape = 'u32[72,128]{1,0:T(1,128)}', space=vmem, size = 0x9000, scoped, tag = 'internal scratch']
  %s0 = inlined_call_operand.hbm [shape: f32[8,32], index: 0, kind: input, shape index: {}]
  %s1 = inlined_call_operand.hbm [shape: bf16[32,64], index: 1, kind: input, shape index: {}]
  %s2 = inlined_call_operand.hbm [shape: f32[1,64], index: 2, kind: input, shape index: {}]
  %s3 = inlined_call_operand.hbm [shape: bf16[64,32], index: 3, kind: input, shape index: {}]
  %s4 = inlined_call_operand.vmem [shape: f32[1,32], index: 4, kind: input, shape index: {}]
  %s5 = inlined_call_operand.hbm [shape: f32[8,32], index: 5, kind: output, shape index: {}]
  %s6 = sld [smem:[#allocation0]]
  $region46: #{_forward_impl.1} parent=0
    _
  %s8 = ssub.s32 1, %s6
  %s9 = scalar_select 0, %s8, %s6
  $region1: #{_forward_impl.1} parent=0
    #allocation2 [shape = 'u8[4096]{0}', space=vmem, size = 0x1000, scoped, tag = 'input window, operand 0, single buffered']
    #allocation3 [shape = 's32[1]{0}', space=sflag, size = 0x4, scoped, tag = 'scoped memory for _forward_impl.1']
    #allocation4 [shape = 's32[1]{0}', space=sflag, size = 0x4, scoped, tag = 'scoped memory for _forward_impl.1']
    #allocation5 [shape = 'u8[8192]{0}', space=vmem, size = 0x2000, scoped, tag = 'input window, operand 1, single buffered']
    #allocation6 [shape = 's32[1]{0}', space=sflag, size = 0x4, scoped, tag = 'scoped memory for _forward_impl.1']
    #allocation7 [shape = 'u8[512]{0}', space=vmem, size = 0x400, scoped, tag = 'input window, operand 2, single buffered']
    #allocation8 [shape = 'u8[16384]{0}', space=vmem, size = 0x4000, scoped, tag = 'input window, operand 3, single buffered']
    #allocation9 [shape = 's32[1]{0}', space=sflag, size = 0x4, scoped, tag = 'scoped memory for _forward_impl.1']
    #allocation10 [shape = 'u8[4096]{0}', space=vmem, size = 0x1000, scoped, tag = 'output window, operand 0, single buffered']
    %10 = vsyncpa [#allocation3], 0
    %11 = vsyncpa [#allocation6], 0
    %12 = vsyncpa [#allocation9], 0
    %13 = vsyncpa [#allocation4], 0
    // Predicated region
    $region2: #{_forward_impl.1} parent=1 // pred_check
      _
    $region3: #{_forward_impl.1} parent=1 // pred_check_branch
      %15 = sbr.rel (0) target = $region5
    $region4: #{_forward_impl.1} parent=1 // pred_region
      %17 = vsyncadd [#allocation3], 0
      %s19 = sshll.u32 %s0, 4
      %s20 = int_to_ptr.hbm [resolvable:$true] %s19
      %s21 = sshll.u32 [#allocation2], 4
      %s22 = int_to_ptr.vmem [resolvable:$true] %s21
      %24 = dma.hbm_to_vmem [thread:$0]  %s20, 128, %s22, [#allocation3]
    $region5: #{_forward_impl.1} parent=1 // pred_fallthru
      _
    // Predicated region
    $region6: #{_forward_impl.1} parent=1 // pred_check
      _
    $region7: #{_forward_impl.1} parent=1 // pred_check_branch
      %26 = sbr.rel (0) target = $region9
    $region8: #{_forward_impl.1} parent=1 // pred_region
      %28 = vsyncadd [#allocation6], 0
      %s29 = sshll.u32 %s1, 4
      %s30 = int_to_ptr.hbm [resolvable:$true] %s29
      %s31 = sshll.u32 [#allocation5], 4
      %s32 = int_to_ptr.vmem [resolvable:$true] %s31
      %37 = dma.hbm_to_vmem [thread:$0]  %s30, 256, %s32, [#allocation6], 64, 64, 4
    $region9: #{_forward_impl.1} parent=1 // pred_fallthru
      _
    // Predicated region
    $region10: #{_forward_impl.1} parent=1 // pred_check
      _
    $region11: #{_forward_impl.1} parent=1 // pred_check_branch
      %39 = sbr.rel (0) target = $region13
    $region12: #{_forward_impl.1} parent=1 // pred_region
      %41 = vsyncadd [#allocation6], 0
      %s43 = sshll.u32 %s2, 4
      %s44 = int_to_ptr.hbm [resolvable:$true] %s43
      %s45 = sshll.u32 [#allocation7], 4
      %s46 = int_to_ptr.vmem [resolvable:$true] %s45
      %48 = dma.hbm_to_vmem [thread:$0]  %s44, 16, %s46, [#allocation6]
    $region13: #{_forward_impl.1} parent=1 // pred_fallthru
      _
    // Predicated region
    $region14: #{_forward_impl.1} parent=1 // pred_check
      _
    $region15: #{_forward_impl.1} parent=1 // pred_check_branch
      %50 = sbr.rel (0) target = $region17
    $region16: #{_forward_impl.1} parent=1 // pred_region
      %52 = vsyncadd [#allocation9], 0
      %s53 = sshll.u32 %s3, 4
      %s54 = int_to_ptr.hbm [resolvable:$true] %s53
      %s55 = sshll.u32 [#allocation8], 4
      %s56 = int_to_ptr.vmem [resolvable:$true] %s55
      %61 = dma.hbm_to_vmem [thread:$0]  %s54, 512, %s56, [#allocation9], 64, 64, 4
    $region17: #{_forward_impl.1} parent=1 // pred_fallthru
      _
    // Predicated region
    $region18: #{_forward_impl.1} parent=1 // pred_check
      _
    $region19: #{_forward_impl.1} parent=1 // pred_check_branch
      %63 = sbr.rel (0) target = $region21
    $region20: #{_forward_impl.1} parent=1 // pred_region
      _
    $region21: #{_forward_impl.1} parent=1 // pred_fallthru
      _
    // Predicated region
    $region22: #{_forward_impl.1} parent=1 // pred_check
      _
    $region23: #{_forward_impl.1} parent=1 // pred_check_branch
      %65 = sbr.rel (0) target = $region25
    $region24: #{_forward_impl.1} parent=1 // pred_region
      %67 = dma.done [#allocation3], 128
    $region25: #{_forward_impl.1} parent=1 // pred_fallthru
      _
    // Predicated region
    $region26: #{_forward_impl.1} parent=1 // pred_check
      _
    $region27: #{_forward_impl.1} parent=1 // pred_check_branch
      %69 = sbr.rel (0) target = $region29
    $region28: #{_forward_impl.1} parent=1 // pred_region
      %71 = dma.done [#allocation6], 256
    $region29: #{_forward_impl.1} parent=1 // pred_fallthru
      _
    // Predicated region
    $region30: #{_forward_impl.1} parent=1 // pred_check
      _
    $region31: #{_forward_impl.1} parent=1 // pred_check_branch
      %73 = sbr.rel (0) target = $region33
    $region32: #{_forward_impl.1} parent=1 // pred_region
      %75 = dma.done [#allocation6], 16
    $region33: #{_forward_impl.1} parent=1 // pred_fallthru
      _
    // Predicated region
    $region34: #{_forward_impl.1} parent=1 // pred_check
      _
    $region35: #{_forward_impl.1} parent=1 // pred_check_branch
      %77 = sbr.rel (0) target = $region37
    $region36: #{_forward_impl.1} parent=1 // pred_region
      %79 = dma.done [#allocation9], 512
    $region37: #{_forward_impl.1} parent=1 // pred_fallthru
      _
    %v81 = vld [vmem:[#allocation2] sm:$0xff]
    %v82 = vpack.c.bf16 %v81, %v81
    %v83 = vld [vmem:[#allocation5] sm:$0xf]
    %v84 = vld [vmem:[#allocation5 + $0x4] sm:$0xf]
    %v85 = vld [vmem:[#allocation5 + $0x8] sm:$0xf]
    %v86 = vld [vmem:[#allocation5 + $0xc] sm:$0xf]
    %v87 = vld [vmem:[#allocation7] sm:$0x1]
    %v89 = vperm.slane %v87, 0
    %v95 = vunpack.c.l.b16 %v83
    %v96 = vunpack.c.l.b16 %v84
    %v97 = vunpack.c.l.b16 %v85
    %v98 = vunpack.c.l.b16 %v86
    %v99 = vpack.c.b16 %v96, %v95
    %v100 = vpack.c.b16 %v98, %v97
    %vm103 = vcmask 261120
    %v105 = vsel %vm103, %v82, 0
    %107 = vmatpush.bf16.msra.mxu0 0
    %108 = vmatpush.bf16.msra.mxu0 0
    %109 = vmatpush.bf16.msra.mxu0 0
    %110 = vmatpush.bf16.msra.mxu0 0
    %111 = vmatpush.bf16.msra.mxu0 0
    %112 = vmatpush.bf16.msra.mxu0 0
    %113 = vmatpush.bf16.msra.mxu0 %v100
    %114 = vmatpush.bf16.msra.mxu0 %v99
    %115 = vmatmul.bf16.gmra.mxu0 %v105
    %v116 = vpop.f32.mrf.mxu0
    %v117 = vadd.f32 %v89, %v116
    %v118 = vpop.f32.mrf.mxu0
    %119 = vdwg.mxu0
    %v120 = vmax.f32 %v117, 0.0
    %v121 = vpack.c.bf16 %v120, %v120
    %v122 = vld [vmem:[#allocation8] sm:$0xf]
    %v123 = vld [vmem:[#allocation8 + $0x4] sm:$0xf]
    %v124 = vld [vmem:[#allocation8 + $0x8] sm:$0xf]
    %v125 = vld [vmem:[#allocation8 + $0xc] sm:$0xf]
    %v126 = vld [vmem:[#allocation8 + $0x10] sm:$0xf]
    %v127 = vld [vmem:[#allocation8 + $0x14] sm:$0xf]
    %v128 = vld [vmem:[#allocation8 + $0x18] sm:$0xf]
    %v129 = vld [vmem:[#allocation8 + $0x1c] sm:$0xf]
    %v130 = vld [vmem:[%s4] sm:$0x1]
    %v132 = vperm.slane %v130, 0
    %v142 = vunpack.c.l.b16 %v122
    %v143 = vunpack.c.l.b16 %v123
    %v144 = vunpack.c.l.b16 %v124
    %v145 = vunpack.c.l.b16 %v125
    %v146 = vunpack.c.l.b16 %v126
    %v147 = vunpack.c.l.b16 %v127
    %v148 = vunpack.c.l.b16 %v128
    %v149 = vunpack.c.l.b16 %v129
    %v150 = vpack.c.b16 %v143, %v142
    %v151 = vpack.c.b16 %v145, %v144
    %v152 = vpack.c.b16 %v147, %v146
    %v153 = vpack.c.b16 %v149, %v148
    %vm158 = vcmask 523264
    %v160 = vsel %vm158, %v121, 0
    %162 = vmatpush.bf16.msra.mxu0 0
    %163 = vmatpush.bf16.msra.mxu0 0
    %164 = vmatpush.bf16.msra.mxu0 0
    %165 = vmatpush.bf16.msra.mxu0 0
    %166 = vmatpush.bf16.msra.mxu0 %v153
    %167 = vmatpush.bf16.msra.mxu0 %v152
    %168 = vmatpush.bf16.msra.mxu0 %v151
    %169 = vmatpush.bf16.msra.mxu0 %v150
    %170 = vmatmul.bf16.gmra.mxu0 %v160
    %v171 = vpop.f32.mrf.mxu0
    %v172 = vadd.f32 %v132, %v171
    %v173 = vpop.f32.mrf.mxu0
    %174 = vdwg.mxu0
    %175 = vst.msk [vmem:[#allocation10] sm:$0xff] %vm103, %v172
    // Predicated region
    $region38: #{_forward_impl.1} parent=1 // pred_check
      _
    $region39: #{_forward_impl.1} parent=1 // pred_check_branch
      %177 = sbr.rel (0) target = $region41
    $region40: #{_forward_impl.1} parent=1 // pred_region
      %179 = vsyncadd [#allocation4], 0
      %s181 = sshll.u32 [#allocation10], 4
      %s182 = int_to_ptr.vmem [resolvable:$true] %s181
      %s183 = sshll.u32 %s5, 4
      %s184 = int_to_ptr.hbm [resolvable:$true] %s183
      %186 = dma.vmem_to_hbm [thread:$0]  %s182, 128, %s184, [#allocation4]
    $region41: #{_forward_impl.1} parent=1 // pred_fallthru
      _
    // Predicated region
    $region42: #{_forward_impl.1} parent=1 // pred_check
      _
    $region43: #{_forward_impl.1} parent=1 // pred_check_branch
      %188 = sbr.rel (0) target = $region45
    $region44: #{_forward_impl.1} parent=1 // pred_region
      %190 = dma.done [#allocation4], 128
    $region45: #{_forward_impl.1} parent=1 // pred_fallthru
      _
    %191 = vsyncpa [#allocation3], 1
    %192 = vsyncpa [#allocation6], 1
    %193 = vsyncpa [#allocation9], 1
    %194 = vsyncpa [#allocation4], 1

</llo_original>
